<compile_context>
chip_gen: v6e
topology: v6e:2x2x1
jax: 0.10.0
libtpu: 0.0.40
codegen_flags: <defaults>
</compile_context>

<pallas_src>
import functools

import jax
import jax.numpy as jnp
from jax import lax
from jax.experimental import pallas as pl
from jax.experimental.pallas import tpu as pltpu


# ----------------------------- helpers -------------------------------------


def _round_up(x, m):
    return ((x + m - 1) // m) * m


def _choose_tm(M, K):
    """Large M tiles (perf), capped so a bf16 (tm, K) X tile stays ~<= 4 MiB."""
    budget = 4 * 1024 * 1024
    tm_cap = max(16, (budget // (2 * K)) // 16 * 16)
    tm = min(512, tm_cap)
    if M <= tm:
        return max(16, _round_up(M, 16))
    return tm


# ----------------------------- Pallas kernels ------------------------------


def _conv_stats_kernel(x_ref, w_ref, y_ref, stats_ref):
    # Full-K GEMM for one M tile: bf16 inputs, f32 accumulation on the MXU.
    y = jnp.dot(x_ref[...], w_ref[...], preferred_element_type=jnp.float32)
    y_ref[...] = y
    # Per-tile BN partial statistics (row 0: sum, row 1: sum of squares, rest 0).
    s = jnp.sum(y, axis=0, keepdims=True)            # (1, Cout_p)
    sq = jnp.sum(y * y, axis=0, keepdims=True)       # (1, Cout_p)
    row = lax.broadcasted_iota(jnp.int32, stats_ref.shape, 0)
    stats_ref[...] = jnp.where(row == 0, s, jnp.where(row == 1, sq, 0.0))


def _bn_act_kernel(y_ref, scale_ref, shift_ref, o_ref, *, apply_relu):
    y = y_ref[...] * scale_ref[...] + shift_ref[...]
    if apply_relu:
        y = jnp.maximum(y, 0.0)
    o_ref[...] = y.astype(o_ref.dtype)


def conv_bn_act_pallas(x_flat, w_flat, gamma, beta, *, eps=1e-5, apply_relu=True):
    M, K = x_flat.shape
    Kw, Cout = w_flat.shape
    assert K == Kw

    # Lane-dense output channels: pad Cout up to a multiple of 128.
    Cout_p = _round_up(Cout, 128)
    # Big M tiles, pad M up so the tile divides it exactly (zero rows contribute 0 to stats).
    tm = _choose_tm(M, K)
    M_p = _round_up(M, tm)
    n_tiles = M_p // tm

    xb = jnp.zeros((M_p, K), jnp.bfloat16).at[:M, :].set(x_flat.astype(jnp.bfloat16))
    wb = jnp.zeros((K, Cout_p), jnp.bfloat16).at[:, :Cout].set(w_flat.astype(jnp.bfloat16))

    # Explicit VMEM budget (double-buffered blocks + headroom), capped for v7x's 64 MiB.
    block_bytes = tm * K * 2 + K * Cout_p * 2 + tm * Cout_p * 4 + 8 * Cout_p * 4
    vmem_limit = int(min(max(4 * block_bytes, 16 << 20), 48 << 20))

    y_p, stats = pl.pallas_call(
        _conv_stats_kernel,
        out_shape=(jax.ShapeDtypeStruct((M_p, Cout_p), jnp.float32),
                   jax.ShapeDtypeStruct((n_tiles * 8, Cout_p), jnp.float32)),
        grid_spec=pltpu.PrefetchScalarGridSpec(
            num_scalar_prefetch=0,
            grid=(n_tiles,),
            in_specs=[pl.BlockSpec((tm, K), lambda i: (i, 0)),
                      pl.BlockSpec((K, Cout_p), lambda i: (0, 0))],
            out_specs=[pl.BlockSpec((tm, Cout_p), lambda i: (i, 0)),
                       pl.BlockSpec((8, Cout_p), lambda i: (i, 0))]),
        compiler_params=pltpu.CompilerParams(
            dimension_semantics=("parallel",),
            vmem_limit_bytes=vmem_limit),
    )(xb, wb)

    # ---- tiny per-channel BN math in f32 (hoisted out of the elementwise kernel) ----
    stats = stats.reshape(n_tiles, 8, Cout_p)
    s = jnp.sum(stats[:, 0, :], axis=0)
    sq = jnp.sum(stats[:, 1, :], axis=0)
    inv_m = 1.0 / M                                   # real row count (padded rows are zero)
    mean = s * inv_m
    var = sq * inv_m - mean * mean                    # biased variance (BatchNorm fwd)
    inv_std = lax.rsqrt(var + eps)
    gamma_p = jnp.zeros((Cout_p,), jnp.float32).at[:Cout].set(gamma.astype(jnp.float32))
    beta_p = jnp.zeros((Cout_p,), jnp.float32).at[:Cout].set(beta.astype(jnp.float32))
    scale = (gamma_p * inv_std).reshape(1, Cout_p)
    shift = (beta_p - mean * gamma_p * inv_std).reshape(1, Cout_p)

    out_p = pl.pallas_call(
        functools.partial(_bn_act_kernel, apply_relu=apply_relu),
        out_shape=jax.ShapeDtypeStruct((M_p, Cout_p), jnp.float32),
        grid_spec=pltpu.PrefetchScalarGridSpec(
            num_scalar_prefetch=0,
            grid=(n_tiles,),
            in_specs=[pl.BlockSpec((tm, Cout_p), lambda i: (i, 0)),
                      pl.BlockSpec((1, Cout_p), lambda i: (0, 0)),
                      pl.BlockSpec((1, Cout_p), lambda i: (0, 0))],
            out_specs=pl.BlockSpec((tm, Cout_p), lambda i: (i, 0))),
        compiler_params=pltpu.CompilerParams(
            dimension_semantics=("parallel",)),
        input_output_aliases={0: 0},                  # normalize Y in place
    )(y_p, scale, shift)

    return out_p[:M, :Cout]


# ------------------------------ JAX glue -----------------------------------
# FPS + ball query + gather: data-dependent, sequential gather work — not a Pallas hot path.


def furthest_point_sample(xyz, npoint):
    """xyz: (B, N, 3) -> inds: (B, npoint) int32  (pointnet2 semantics: start at 0)."""
    B, N, _ = xyz.shape
    binds = jnp.arange(B)

    def body(i, state):
        inds, dists, farthest = state
        inds = inds.at[:, i].set(farthest)
        centroid = xyz[binds, farthest][:, None, :]          # (B, 1, 3)
        d = jnp.sum((xyz - centroid) ** 2, axis=-1)          # (B, N)
        dists = jnp.minimum(dists, d)
        farthest = jnp.argmax(dists, axis=-1).astype(jnp.int32)
        return inds, dists, farthest

    inds0 = jnp.zeros((B, npoint), dtype=jnp.int32)
    dists0 = jnp.full((B, N), 1e10, dtype=jnp.float32)
    far0 = jnp.zeros((B,), dtype=jnp.int32)
    inds, _, _ = lax.fori_loop(0, npoint, body, (inds0, dists0, far0))
    return inds


def ball_query(xyz, new_xyz, radius, nsample):
    """pointnet2 ball_query: first `nsample` points (by index) with d^2 < r^2,
    padded with the first found index."""
    N = xyz.shape[1]
    d2 = jnp.sum((new_xyz[:, :, None, :] - xyz[:, None, :, :]) ** 2, axis=-1)
    mask = d2 < radius * radius                              # (B, npoint, N)
    ar = jnp.arange(N)
    keys = jnp.where(mask, ar, N + ar)                       # in-radius first, index order
    order = jnp.argsort(keys, axis=-1)[..., :nsample]        # (B, npoint, nsample)
    cnt = jnp.sum(mask, axis=-1)                             # (B, npoint)
    valid = jnp.arange(nsample)[None, None, :] < cnt[..., None]
    idx = jnp.where(valid, order, order[..., :1])
    return idx.astype(jnp.int32)


def _group_and_flatten(xyz, features, *, radius, gather_size, stride):
    """Returns selected center xyz (B, npoint, 3) and GEMM input (M, K)."""
    B, N, Cin = features.shape
    npoint = (N + stride - 1) // stride
    inds = furthest_point_sample(xyz, npoint)                # (B, npoint)
    b1 = jnp.arange(B)[:, None]
    new_xyz = xyz[b1, inds]                                  # (B, npoint, 3)
    idx = ball_query(xyz, new_xyz, radius, gather_size)      # (B, npoint, ns)
    b2 = jnp.arange(B)[:, None, None]
    grouped_xyz = xyz[b2, idx] - new_xyz[:, :, None, :]      # centered local xyz
    grouped_feat = features[b2, idx]                         # (B, npoint, ns, Cin)
    g = jnp.concatenate([grouped_xyz, grouped_feat], axis=-1)  # (B, npoint, ns, 3+Cin)
    g = jnp.transpose(g, (0, 1, 3, 2))                       # (B, npoint, 3+Cin, ns)
    M = B * npoint
    K = (3 + Cin) * gather_size
    x_flat = g.reshape(M, K).astype(jnp.float32)
    return new_xyz, x_flat, npoint


def conv_bn_layer_forward(xyz, features, params, *, radius, gather_size,
                          stride=1, eps=1e-5, apply_relu=True):
    B, N, Cin = features.shape
    Cout = params["conv_w"].shape[0]
    new_xyz, x_flat, npoint = _group_and_flatten(
        xyz, features, radius=radius, gather_size=gather_size, stride=stride)
    K = x_flat.shape[1]
    w_flat = params["conv_w"].reshape(Cout, K).T.astype(jnp.float32)  # (K, Cout)
    y = conv_bn_act_pallas(x_flat, w_flat, params["gamma"], params["beta"],
                           eps=eps, apply_relu=apply_relu)
    return new_xyz, y.reshape(B, npoint, Cout)


def conv_bn_layer_reference(xyz, features, params, *, radius, gather_size,
                            stride=1, eps=1e-5, apply_relu=True,
                            gemm_dtype=jnp.float32):
    """Pure-JAX reference (same math as the PyTorch module in training mode).
    gemm_dtype=bfloat16 matches the kernel's mixed-precision GEMM for a tight check."""
    B, N, Cin = features.shape
    Cout = params["conv_w"].shape[0]
    new_xyz, x_flat, npoint = _group_and_flatten(
        xyz, features, radius=radius, gather_size=gather_size, stride=stride)
    w_flat = params["conv_w"].reshape(Cout, x_flat.shape[1]).T
    y = jnp.dot(x_flat.astype(gemm_dtype), w_flat.astype(gemm_dtype),
                preferred_element_type=jnp.float32)          # conv (1 x gather_size)
    mean = y.mean(axis=0)
    var = y.var(axis=0)                                      # biased, like BN fwd
    y = (y - mean) / jnp.sqrt(var + eps) * params["gamma"] + params["beta"]
    if apply_relu:
        y = jnp.maximum(y, 0.0)
    return new_xyz, y.reshape(B, npoint, Cout)


# --------------------------------- main -------------------------------------

if __name__ == "__main__":
    key = jax.random.PRNGKey(0)
    k1, k2, k3, k4, k5 = jax.random.split(key, 5)

    # Small shapes: B=2 batches, N=64 points, Cin=5 feature channels,
    # gather_size=16 neighbors, Cout=32, stride=1 (so npoint == N).
    B, N, Cin, Cout, gather_size = 2, 64, 5, 32, 16
    radius = 0.2

    xyz = jax.random.uniform(k1, (B, N, 3), dtype=jnp.float32)
    features = jax.random.normal(k2, (B, N, Cin), dtype=jnp.float32)

    # Deterministic synthetic parameters (Conv2d weight: (Cout, Cin+3, 1, gather_size)).
    fan_in = (Cin + 3) * gather_size
    bound = 1.0 / (fan_in ** 0.5)
    conv_w = jax.random.uniform(k3, (Cout, Cin + 3, 1, gather_size),
                                minval=-bound, maxval=bound, dtype=jnp.float32)
    gamma = jax.random.uniform(k4, (Cout,), minval=0.5, maxval=1.5, dtype=jnp.float32)
    beta = jax.random.uniform(k5, (Cout,), minval=-0.1, maxval=0.1, dtype=jnp.float32)
    params = dict(conv_w=conv_w, gamma=gamma, beta=beta)

    fwd = jax.jit(functools.partial(conv_bn_layer_forward, radius=radius,
                                    gather_size=gather_size, stride=1,
                                    apply_relu=True))
    new_xyz, y = fwd(xyz, features, params)
    jax.block_until_ready((new_xyz, y))

    # Tight check vs a reference using the same bf16-input / f32-accumulate GEMM recipe.
    ref_xyz_bf, ref_y_bf = conv_bn_layer_reference(
        xyz, features, params, radius=radius, gather_size=gather_size,
        stride=1, apply_relu=True, gemm_dtype=jnp.bfloat16)
    # Loose check vs the full-f32, PyTorch-faithful reference (bf16 GEMM rounding only).
    ref_xyz, ref_y = conv_bn_layer_reference(
        xyz, features, params, radius=radius, gather_size=gather_size,
        stride=1, apply_relu=True, gemm_dtype=jnp.float32)

    assert y.shape == (B, N, Cout) and new_xyz.shape == (B, N, 3)
    assert jnp.allclose(new_xyz, ref_xyz)
    assert jnp.allclose(y, ref_y_bf, rtol=2e-3, atol=2e-3)
    assert jnp.allclose(y, ref_y, rtol=5e-2, atol=5e-2)

    print("KERNEL_OK")
</pallas_src>

<mosaic_0001>
module attributes {stable_mosaic.version = 11 : i64} {
  func.func @_conv_stats_kernel(%arg0: i32, %arg1: memref<128x128xbf16, #tpu.memory_space<vmem>>, %arg2: memref<128x128xbf16, #tpu.memory_space<vmem>>, %arg3: memref<128x128xf32, #tpu.memory_space<vmem>>, %arg4: memref<8x128xf32, #tpu.memory_space<vmem>>) attributes {dimension_semantics = [#tpu.dimension_semantics<parallel>], iteration_bounds = array<i64: 1>, scalar_prefetch = 0 : i64, scratch_operands = 0 : i64, tpu.core_type = #tpu.core_type<tc>, window_params = [{transform_indices = @transform_0, window_bounds = array<i64: 128, 128>}, {pipeline_mode = #tpu.pipeline_mode<synchronous>, transform_indices = @transform_1, window_bounds = array<i64: 128, 128>}, {transform_indices = @transform_2, window_bounds = array<i64: 128, 128>}, {transform_indices = @transform_3, window_bounds = array<i64: 8, 128>}]} {
    %c0 = arith.constant 0 : index
    %c0_0 = arith.constant 0 : index
    %0 = vector.load %arg1[%c0, %c0_0] : memref<128x128xbf16, #tpu.memory_space<vmem>>, vector<128x128xbf16>
    %c0_1 = arith.constant 0 : index
    %c0_2 = arith.constant 0 : index
    %1 = vector.load %arg2[%c0_1, %c0_2] : memref<128x128xbf16, #tpu.memory_space<vmem>>, vector<128x128xbf16>
    %cst = arith.constant dense<0.000000e+00> : vector<128x128xf32>
    %2 = tpu.matmul %0, %1, %cst {dimension_numbers = #tpu.dot_dimension_numbers<[1], [0], [0], [1], [0, 0, 1, 1], [], []>} : vector<128x128xbf16>, vector<128x128xbf16>, vector<128x128xf32> -> vector<128x128xf32>
    %c0_3 = arith.constant 0 : index
    %c0_4 = arith.constant 0 : index
    %3 = vector.load %arg3[%c0_3, %c0_4] : memref<128x128xf32, #tpu.memory_space<vmem>>, vector<128x128xf32>
    tpu.vector_store %arg3[%c0_3, %c0_4], %2 {strides = array<i32>} : memref<128x128xf32, #tpu.memory_space<vmem>>, vector<128x128xf32>,
    %cst_5 = arith.constant dense<0.000000e+00> : vector<128xf32>
    %4 = vector.multi_reduction <add>, %2, %cst_5 [0] : vector<128x128xf32> to vector<128xf32>
    %5 = vector.shape_cast %4 : vector<128xf32> to vector<1x128xf32>
    %6 = arith.mulf %2, %2 : vector<128x128xf32>
    %cst_6 = arith.constant dense<0.000000e+00> : vector<128xf32>
    %7 = vector.multi_reduction <add>, %6, %cst_6 [0] : vector<128x128xf32> to vector<128xf32>
    %8 = vector.shape_cast %7 : vector<128xf32> to vector<1x128xf32>
    %9 = tpu.iota {dimensions = array<i32: 0>} : vector<8x128xi32>
    %c0_i32 = arith.constant 0 : i32
    %10 = vector.broadcast %c0_i32 : i32 to vector<8x128xi32>
    %11 = arith.cmpi eq, %9, %10 : vector<8x128xi32>
    %c1_i32 = arith.constant 1 : i32
    %12 = vector.broadcast %c1_i32 : i32 to vector<8x128xi32>
    %13 = arith.cmpi eq, %9, %12 : vector<8x128xi32>
    %cst_7 = arith.constant 0.000000e+00 : f32
    %14 = vector.shape_cast %8 : vector<1x128xf32> to vector<1x128xf32>
    %15 = vector.broadcast %14 : vector<1x128xf32> to vector<8x128xf32>
    %16 = vector.broadcast %cst_7 : f32 to vector<8x128xf32>
    %17 = arith.select %13, %15, %16 : vector<8x128xi1>, vector<8x128xf32>
    %18 = vector.shape_cast %5 : vector<1x128xf32> to vector<1x128xf32>
    %19 = vector.broadcast %18 : vector<1x128xf32> to vector<8x128xf32>
    %20 = arith.select %11, %19, %17 : vector<8x128xi1>, vector<8x128xf32>
    %c0_8 = arith.constant 0 : index
    %c0_9 = arith.constant 0 : index
    %21 = vector.load %arg4[%c0_8, %c0_9] : memref<8x128xf32, #tpu.memory_space<vmem>>, vector<8x128xf32>
    tpu.vector_store %arg4[%c0_8, %c0_9], %20 {strides = array<i32>} : memref<8x128xf32, #tpu.memory_space<vmem>>, vector<8x128xf32>,
    return
  }
  func.func @transform_0(%arg0: i32) -> (i32, i32) {
    %c0_i32 = arith.constant 0 : i32
    %c0_i32_0 = arith.constant 0 : i32
    return %arg0, %c0_i32 : i32, i32
  }
  func.func @transform_1(%arg0: i32) -> (i32, i32) {
    %c0_i32 = arith.constant 0 : i32
    %c0_i32_0 = arith.constant 0 : i32
    %c0_i32_1 = arith.constant 0 : i32
    return %c0_i32, %c0_i32_0 : i32, i32
  }
  func.func @transform_2(%arg0: i32) -> (i32, i32) {
    %c0_i32 = arith.constant 0 : i32
    %c0_i32_0 = arith.constant 0 : i32
    return %arg0, %c0_i32 : i32, i32
  }
  func.func @transform_3(%arg0: i32) -> (i32, i32) {
    %c0_i32 = arith.constant 0 : i32
    %c0_i32_0 = arith.constant 0 : i32
    return %arg0, %c0_i32 : i32, i32
  }
}

module attributes {stable_mosaic.version = 11 : i64} {
  func.func @_bn_act_kernel(%arg0: i32, %arg1: memref<128x128xf32, #tpu.memory_space<vmem>>, %arg2: memref<1x128xf32, #tpu.memory_space<vmem>>, %arg3: memref<1x128xf32, #tpu.memory_space<vmem>>, %arg4: memref<128x128xf32, #tpu.memory_space<vmem>>) attributes {dimension_semantics = [#tpu.dimension_semantics<parallel>], iteration_bounds = array<i64: 1>, scalar_prefetch = 0 : i64, scratch_operands = 0 : i64, tpu.core_type = #tpu.core_type<tc>, window_params = [{transform_indices = @transform_0, window_bounds = array<i64: 128, 128>}, {pipeline_mode = #tpu.pipeline_mode<synchronous>, transform_indices = @transform_1, window_bounds = array<i64: 1, 128>}, {pipeline_mode = #tpu.pipeline_mode<synchronous>, transform_indices = @transform_2, window_bounds = array<i64: 1, 128>}, {transform_indices = @transform_3, window_bounds = array<i64: 128, 128>}]} {
    %c0 = arith.constant 0 : index
    %c0_0 = arith.constant 0 : index
    %0 = vector.load %arg1[%c0, %c0_0] : memref<128x128xf32, #tpu.memory_space<vmem>>, vector<128x128xf32>
    %c0_1 = arith.constant 0 : index
    %c0_2 = arith.constant 0 : index
    %1 = vector.load %arg2[%c0_1, %c0_2] : memref<1x128xf32, #tpu.memory_space<vmem>>, vector<1x128xf32>
    %2 = vector.broadcast %1 : vector<1x128xf32> to vector<128x128xf32>
    %3 = arith.mulf %0, %2 : vector<128x128xf32>
    %c0_3 = arith.constant 0 : index
    %c0_4 = arith.constant 0 : index
    %4 = vector.load %arg3[%c0_3, %c0_4] : memref<1x128xf32, #tpu.memory_space<vmem>>, vector<1x128xf32>
    %5 = vector.broadcast %4 : vector<1x128xf32> to vector<128x128xf32>
    %6 = arith.addf %3, %5 : vector<128x128xf32>
    %cst = arith.constant 0.000000e+00 : f32
    %7 = vector.broadcast %cst : f32 to vector<128x128xf32>
    %8 = arith.maximumf %6, %7 : vector<128x128xf32>
    %c0_5 = arith.constant 0 : index
    %c0_6 = arith.constant 0 : index
    %9 = vector.load %arg4[%c0_5, %c0_6] : memref<128x128xf32, #tpu.memory_space<vmem>>, vector<128x128xf32>
    tpu.vector_store %arg4[%c0_5, %c0_6], %8 {strides = array<i32>} : memref<128x128xf32, #tpu.memory_space<vmem>>, vector<128x128xf32>,
    return
  }
  func.func @transform_0(%arg0: i32) -> (i32, i32) {
    %c0_i32 = arith.constant 0 : i32
    %c0_i32_0 = arith.constant 0 : i32
    return %arg0, %c0_i32 : i32, i32
  }
  func.func @transform_1(%arg0: i32) -> (i32, i32) {
    %c0_i32 = arith.constant 0 : i32
    %c0_i32_0 = arith.constant 0 : i32
    %c0_i32_1 = arith.constant 0 : i32
    return %c0_i32, %c0_i32_0 : i32, i32
  }
  func.func @transform_2(%arg0: i32) -> (i32, i32) {
    %c0_i32 = arith.constant 0 : i32
    %c0_i32_0 = arith.constant 0 : i32
    %c0_i32_1 = arith.constant 0 : i32
    return %c0_i32, %c0_i32_0 : i32, i32
  }
  func.func @transform_3(%arg0: i32) -> (i32, i32) {
    %c0_i32 = arith.constant 0 : i32
    %c0_i32_0 = arith.constant 0 : i32
    return %arg0, %c0_i32 : i32, i32
  }
}

</mosaic_0001>

<llo_original>
// kernel: custom-call.8
$region0: #{custom-call.8}
  %s0 = inlined_call_operand.vmem [shape: f32[2,64], index: 0, kind: output, shape index: {}]

// kernel: conv_bn_layer_forward.3
$region0: #{conv_bn_layer_forward.3}
  #allocation0 [shape = 'u32[]', space=smem, size = 0x4, offset = 0x4, fixed_abs, tag = 'smem constant byte address 0x4 - core index']
  #allocation1 [shape = 'u32[144,128]{1,0:T(1,128)}', space=vmem, size = 0x12000, scoped, tag = 'internal scratch']
  %s0 = inlined_call_operand.vmem [shape: f32[128,128], index: 0, kind: input, shape index: {}, may-alias: {0,3}]
  %s1 = inlined_call_operand.vmem [shape: f32[1,128], index: 1, kind: input, shape index: {}]
  %s2 = inlined_call_operand.vmem [shape: f32[1,128], index: 2, kind: input, shape index: {}]
  %s3 = inlined_call_operand.vmem [shape: f32[128,128], index: 3, kind: output, shape index: {}, may-alias: {0,3}]
  %s4 = sld [smem:[#allocation0]]
  $region22: #{conv_bn_layer_forward.3} parent=0
    _
  %s6 = ssub.s32 1, %s4
  %s7 = scalar_select 0, %s6, %s4
  // Predicated region
  $region2: #{conv_bn_layer_forward.3} parent=0 // pred_check
    _
  $region3: #{conv_bn_layer_forward.3} parent=0 // pred_check_branch
    %9 = sbr.rel (0) target = $region5
  $region4: #{conv_bn_layer_forward.3} parent=0 // pred_region
    _
  $region5: #{conv_bn_layer_forward.3} parent=0 // pred_fallthru
    _
  // Predicated region
  $region6: #{conv_bn_layer_forward.3} parent=0 // pred_check
    _
  $region7: #{conv_bn_layer_forward.3} parent=0 // pred_check_branch
    %11 = sbr.rel (0) target = $region9
  $region8: #{conv_bn_layer_forward.3} parent=0 // pred_region
    _
  $region9: #{conv_bn_layer_forward.3} parent=0 // pred_fallthru
    _
  // Predicated region
  $region10: #{conv_bn_layer_forward.3} parent=0 // pred_check
    _
  $region11: #{conv_bn_layer_forward.3} parent=0 // pred_check_branch
    %13 = sbr.rel (0) target = $region13
  $region12: #{conv_bn_layer_forward.3} parent=0 // pred_region
    _
  $region13: #{conv_bn_layer_forward.3} parent=0 // pred_fallthru
    _
  %v14 = vld [vmem:[%s0] sm:$0xff]
  %v15 = vld [vmem:[%s0 + $0x8] sm:$0xff]
  %v16 = vld [vmem:[%s0 + $0x10] sm:$0xff]
  %v17 = vld [vmem:[%s0 + $0x18] sm:$0xff]
  %v18 = vld [vmem:[%s0 + $0x20] sm:$0xff]
  %v19 = vld [vmem:[%s0 + $0x28] sm:$0xff]
  %v20 = vld [vmem:[%s0 + $0x30] sm:$0xff]
  %v21 = vld [vmem:[%s0 + $0x38] sm:$0xff]
  %v22 = vld [vmem:[%s0 + $0x40] sm:$0xff]
  %v23 = vld [vmem:[%s0 + $0x48] sm:$0xff]
  %v24 = vld [vmem:[%s0 + $0x50] sm:$0xff]
  %v25 = vld [vmem:[%s0 + $0x58] sm:$0xff]
  %v26 = vld [vmem:[%s0 + $0x60] sm:$0xff]
  %v27 = vld [vmem:[%s0 + $0x68] sm:$0xff]
  %v28 = vld [vmem:[%s0 + $0x70] sm:$0xff]
  %v29 = vld [vmem:[%s0 + $0x78] sm:$0xff]
  %v30 = vld [vmem:[%s1] sm:$0x1]
  %v32 = vlaneseq
  %v33 = vshrl.u32 %v32, 7
  %v34 = vsub.s32 0, %v33
  %v35 = vrot.slane %v30, %v34
  %v37 = vmul.f32 %v14, %v35
  %v38 = vmul.f32 %v15, %v35
  %v39 = vmul.f32 %v16, %v35
  %v40 = vmul.f32 %v17, %v35
  %v41 = vmul.f32 %v18, %v35
  %v42 = vmul.f32 %v19, %v35
  %v43 = vmul.f32 %v20, %v35
  %v44 = vmul.f32 %v21, %v35
  %v45 = vmul.f32 %v22, %v35
  %v46 = vmul.f32 %v23, %v35
  %v47 = vmul.f32 %v24, %v35
  %v48 = vmul.f32 %v25, %v35
  %v49 = vmul.f32 %v26, %v35
  %v50 = vmul.f32 %v27, %v35
  %v51 = vmul.f32 %v28, %v35
  %v52 = vmul.f32 %v29, %v35
  %v53 = vld [vmem:[%s2] sm:$0x1]
  %v55 = vlaneseq
  %v56 = vshrl.u32 %v55, 7
  %v57 = vsub.s32 0, %v56
  %v58 = vrot.slane %v53, %v57
  %v60 = vadd.f32 %v37, %v58
  %v61 = vadd.f32 %v38, %v58
  %v62 = vadd.f32 %v39, %v58
  %v63 = vadd.f32 %v40, %v58
  %v64 = vadd.f32 %v41, %v58
  %v65 = vadd.f32 %v42, %v58
  %v66 = vadd.f32 %v43, %v58
  %v67 = vadd.f32 %v44, %v58
  %v68 = vadd.f32 %v45, %v58
  %v69 = vadd.f32 %v46, %v58
  %v70 = vadd.f32 %v47, %v58
  %v71 = vadd.f32 %v48, %v58
  %v72 = vadd.f32 %v49, %v58
  %v73 = vadd.f32 %v50, %v58
  %v74 = vadd.f32 %v51, %v58
  %v75 = vadd.f32 %v52, %v58
  %v76 = vmax.f32 %v60, 0.0
  %v77 = vmax.f32 %v61, 0.0
  %v78 = vmax.f32 %v62, 0.0
  %v79 = vmax.f32 %v63, 0.0
  %v80 = vmax.f32 %v64, 0.0
  %v81 = vmax.f32 %v65, 0.0
  %v82 = vmax.f32 %v66, 0.0
  %v83 = vmax.f32 %v67, 0.0
  %v84 = vmax.f32 %v68, 0.0
  %v85 = vmax.f32 %v69, 0.0
  %v86 = vmax.f32 %v70, 0.0
  %v87 = vmax.f32 %v71, 0.0
  %v88 = vmax.f32 %v72, 0.0
  %v89 = vmax.f32 %v73, 0.0
  %v90 = vmax.f32 %v74, 0.0
  %v91 = vmax.f32 %v75, 0.0
  %92 = vst [vmem:[%s3] sm:$0xff] %v76
  %93 = vst [vmem:[%s3 + $0x8] sm:$0xff] %v77
  %94 = vst [vmem:[%s3 + $0x10] sm:$0xff] %v78
  %95 = vst [vmem:[%s3 + $0x18] sm:$0xff] %v79
  %96 = vst [vmem:[%s3 + $0x20] sm:$0xff] %v80
  %97 = vst [vmem:[%s3 + $0x28] sm:$0xff] %v81
  %98 = vst [vmem:[%s3 + $0x30] sm:$0xff] %v82
  %99 = vst [vmem:[%s3 + $0x38] sm:$0xff] %v83
  %100 = vst [vmem:[%s3 + $0x40] sm:$0xff] %v84
  %101 = vst [vmem:[%s3 + $0x48] sm:$0xff] %v85
  %102 = vst [vmem:[%s3 + $0x50] sm:$0xff] %v86
  %103 = vst [vmem:[%s3 + $0x58] sm:$0xff] %v87
  %104 = vst [vmem:[%s3 + $0x60] sm:$0xff] %v88
  %105 = vst [vmem:[%s3 + $0x68] sm:$0xff] %v89
  %106 = vst [vmem:[%s3 + $0x70] sm:$0xff] %v90
  %107 = vst [vmem:[%s3 + $0x78] sm:$0xff] %v91
  // Predicated region
  $region14: #{conv_bn_layer_forward.3} parent=0 // pred_check
    _
  $region15: #{conv_bn_layer_forward.3} parent=0 // pred_check_branch
    %109 = sbr.rel (0) target = $region17
  $region16: #{conv_bn_layer_forward.3} parent=0 // pred_region
    _
  $region17: #{conv_bn_layer_forward.3} parent=0 // pred_fallthru
    _
  // Predicated region
  $region18: #{conv_bn_layer_forward.3} parent=0 // pred_check
    _
  $region19: #{conv_bn_layer_forward.3} parent=0 // pred_check_branch
    %111 = sbr.rel (0) target = $region21
  $region20: #{conv_bn_layer_forward.3} parent=0 // pred_region
    _
  $region21: #{conv_bn_layer_forward.3} parent=0 // pred_fallthru
    _

// kernel: conv_bn_layer_forward.2
$region0: #{conv_bn_layer_forward.2}
  #allocation0 [shape = 'u32[]', space=smem, size = 0x4, offset = 0x4, fixed_abs, tag = 'smem constant byte address 0x4 - core index']
  #allocation1 [shape = 'u32[144,128]{1,0:T(1,128)}', space=vmem, size = 0x12000, scoped, tag = 'internal scratch']
  %s0 = inlined_call_operand.vmem [shape: bf16[128,128], index: 0, kind: input, shape index: {}]
  %s1 = inlined_call_operand.vmem [shape: bf16[128,128], index: 1, kind: input, shape index: {}]
  %s2 = inlined_call_operand.vmem [shape: f32[128,128], index: 2, kind: output, shape index: {0}]
  %s3 = inlined_call_operand.vmem [shape: f32[8,128], index: 3, kind: output, shape index: {1}]
  %4 = xla_tuple %s2, %s3
  %s5 = sld [smem:[#allocation0]]
  $region26: #{conv_bn_layer_forward.2} parent=0
    _
  %s7 = ssub.s32 1, %s5
  %s8 = scalar_select 0, %s7, %s5
  // Predicated region
  $region2: #{conv_bn_layer_forward.2} parent=0 // pred_check
    _
  $region3: #{conv_bn_layer_forward.2} parent=0 // pred_check_branch
    %10 = sbr.rel (0) target = $region5
  $region4: #{conv_bn_layer_forward.2} parent=0 // pred_region
    _
  $region5: #{conv_bn_layer_forward.2} parent=0 // pred_fallthru
    _
  // Predicated region
  $region6: #{conv_bn_layer_forward.2} parent=0 // pred_check
    _
  $region7: #{conv_bn_layer_forward.2} parent=0 // pred_check_branch
    %12 = sbr.rel (0) target = $region9
  $region8: #{conv_bn_layer_forward.2} parent=0 // pred_region
    _
  $region9: #{conv_bn_layer_forward.2} parent=0 // pred_fallthru
    _
  %v14 = vld [vmem:[%s0] sm:$0xf]
  %v15 = vld [vmem:[%s0 + $0x4] sm:$0xf]
  %v16 = vld [vmem:[%s0 + $0x8] sm:$0xf]
  %v17 = vld [vmem:[%s0 + $0xc] sm:$0xf]
  %v18 = vld [vmem:[%s0 + $0x10] sm:$0xf]
  %v19 = vld [vmem:[%s0 + $0x14] sm:$0xf]
  %v20 = vld [vmem:[%s0 + $0x18] sm:$0xf]
  %v21 = vld [vmem:[%s0 + $0x1c] sm:$0xf]
  %v22 = vld [vmem:[%s0 + $0x20] sm:$0xf]
  %v23 = vld [vmem:[%s0 + $0x24] sm:$0xf]
  %v24 = vld [vmem:[%s0 + $0x28] sm:$0xf]
  %v25 = vld [vmem:[%s0 + $0x2c] sm:$0xf]
  %v26 = vld [vmem:[%s0 + $0x30] sm:$0xf]
  %v27 = vld [vmem:[%s0 + $0x34] sm:$0xf]
  %v28 = vld [vmem:[%s0 + $0x38] sm:$0xf]
  %v29 = vld [vmem:[%s0 + $0x3c] sm:$0xf]
  %v30 = vld [vmem:[%s1] sm:$0xf]
  %v31 = vld [vmem:[%s1 + $0x4] sm:$0xf]
  %v32 = vld [vmem:[%s1 + $0x8] sm:$0xf]
  %v33 = vld [vmem:[%s1 + $0xc] sm:$0xf]
  %v34 = vld [vmem:[%s1 + $0x10] sm:$0xf]
  %v35 = vld [vmem:[%s1 + $0x14] sm:$0xf]
  %v36 = vld [vmem:[%s1 + $0x18] sm:$0xf]
  %v37 = vld [vmem:[%s1 + $0x1c] sm:$0xf]
  %v38 = vld [vmem:[%s1 + $0x20] sm:$0xf]
  %v39 = vld [vmem:[%s1 + $0x24] sm:$0xf]
  %v40 = vld [vmem:[%s1 + $0x28] sm:$0xf]
  %v41 = vld [vmem:[%s1 + $0x2c] sm:$0xf]
  %v42 = vld [vmem:[%s1 + $0x30] sm:$0xf]
  %v43 = vld [vmem:[%s1 + $0x34] sm:$0xf]
  %v44 = vld [vmem:[%s1 + $0x38] sm:$0xf]
  %v45 = vld [vmem:[%s1 + $0x3c] sm:$0xf]
  %v62 = vunpack.c.l.b16 %v14
  %v63 = vunpack.c.l.b16 %v15
  %v64 = vunpack.c.l.b16 %v16
  %v65 = vunpack.c.l.b16 %v17
  %v66 = vunpack.c.l.b16 %v18
  %v67 = vunpack.c.l.b16 %v19
  %v68 = vunpack.c.l.b16 %v20
  %v69 = vunpack.c.l.b16 %v21
  %v70 = vunpack.c.l.b16 %v22
  %v71 = vunpack.c.l.b16 %v23
  %v72 = vunpack.c.l.b16 %v24
  %v73 = vunpack.c.l.b16 %v25
  %v74 = vunpack.c.l.b16 %v26
  %v75 = vunpack.c.l.b16 %v27
  %v76 = vunpack.c.l.b16 %v28
  %v77 = vunpack.c.l.b16 %v29
  %v78 = vpack.c.b16 %v63, %v62
  %v79 = vpack.c.b16 %v65, %v64
  %v80 = vpack.c.b16 %v67, %v66
  %v81 = vpack.c.b16 %v69, %v68
  %v82 = vpack.c.b16 %v71, %v70
  %v83 = vpack.c.b16 %v73, %v72
  %v84 = vpack.c.b16 %v75, %v74
  %v85 = vpack.c.b16 %v77, %v76
  %v110 = vunpack.c.l.b16 %v30
  %v111 = vunpack.c.l.b16 %v31
  %v112 = vunpack.c.l.b16 %v32
  %v113 = vunpack.c.l.b16 %v33
  %v114 = vunpack.c.l.b16 %v34
  %v115 = vunpack.c.l.b16 %v35
  %v116 = vunpack.c.l.b16 %v36
  %v117 = vunpack.c.l.b16 %v37
  %v118 = vunpack.c.l.b16 %v38
  %v119 = vunpack.c.l.b16 %v39
  %v120 = vunpack.c.l.b16 %v40
  %v121 = vunpack.c.l.b16 %v41
  %v122 = vunpack.c.l.b16 %v42
  %v123 = vunpack.c.l.b16 %v43
  %v124 = vunpack.c.l.b16 %v44
  %v125 = vunpack.c.l.b16 %v45
  %v126 = vpack.c.b16 %v111, %v110
  %v127 = vpack.c.b16 %v113, %v112
  %v128 = vpack.c.b16 %v115, %v114
  %v129 = vpack.c.b16 %v117, %v116
  %v130 = vpack.c.b16 %v119, %v118
  %v131 = vpack.c.b16 %v121, %v120
  %v132 = vpack.c.b16 %v123, %v122
  %v133 = vpack.c.b16 %v125, %v124
  %142 = vmatprep.subr.bf16.mxu0 0
  %143 = vmatpush1.bf16.msra.mxu0 %v133
  %144 = vmatprep.subr.bf16.mxu0 0
  %145 = vmatpush1.bf16.msra.mxu0 %v132
  %146 = vmatprep.subr.bf16.mxu0 0
  %147 = vmatpush1.bf16.msra.mxu0 %v131
  %148 = vmatprep.subr.bf16.mxu0 0
  %149 = vmatpush1.bf16.msra.mxu0 %v130
  %150 = vmatprep.subr.bf16.mxu0 0
  %151 = vmatpush1.bf16.msra.mxu0 %v129
  %152 = vmatprep.subr.bf16.mxu0 0
  %153 = vmatpush1.bf16.msra.mxu0 %v128
  %154 = vmatprep.subr.bf16.mxu0 0
  %155 = vmatpush1.bf16.msra.mxu0 %v127
  %156 = vmatprep.subr.bf16.mxu0 0
  %157 = vmatpush1.bf16.msra.mxu0 %v126
  %158 = vmatprep.subr.bf16.mxu0 0
  %159 = vmatpush2.bf16.msra.mxu0 0
  %160 = vmatprep.subr.bf16.mxu0 0
  %161 = vmatpush2.bf16.msra.mxu0 0
  %162 = vmatprep.subr.bf16.mxu0 0
  %163 = vmatpush2.bf16.msra.mxu0 0
  %164 = vmatprep.subr.bf16.mxu0 0
  %165 = vmatpush2.bf16.msra.mxu0 0
  %166 = vmatprep.subr.bf16.mxu0 0
  %167 = vmatpush2.bf16.msra.mxu0 0
  %168 = vmatprep.subr.bf16.mxu0 0
  %169 = vmatpush2.bf16.msra.mxu0 0
  %170 = vmatprep.subr.bf16.mxu0 0
  %171 = vmatpush2.bf16.msra.mxu0 0
  %172 = vmatprep.subr.bf16.mxu0 0
  %173 = vmatpush2.bf16.msra.mxu0 0
  %174 = vmatprep.mubr.bf16.mxu0 0
  %175 = vmatmul.mubr.bf16.gmra.mxu0 %v78
  %v176 = vpop.f32.mrf.mxu0
  %v177 = vadd.f32 0.0, %v176
  %v178 = vpop.f32.mrf.mxu0
  %v179 = vpop.f32.mrf.mxu0
  %v180 = vadd.f32 0.0, %v179
  %v181 = vpop.f32.mrf.mxu0
  %182 = vmatprep.mubr.bf16.mxu0 0
  %183 = vmatmul.mubr.bf16.gmra.mxu0 %v79
  %v184 = vpop.f32.mrf.mxu0
  %v185 = vadd.f32 0.0, %v184
  %v186 = vpop.f32.mrf.mxu0
  %v187 = vpop.f32.mrf.mxu0
  %v188 = vadd.f32 0.0, %v187
  %v189 = vpop.f32.mrf.mxu0
  %190 = vmatprep.mubr.bf16.mxu0 0
  %191 = vmatmul.mubr.bf16.gmra.mxu0 %v80
  %v192 = vpop.f32.mrf.mxu0
  %v193 = vadd.f32 0.0, %v192
  %v194 = vpop.f32.mrf.mxu0
  %v195 = vpop.f32.mrf.mxu0
  %v196 = vadd.f32 0.0, %v195
  %v197 = vpop.f32.mrf.mxu0
  %198 = vmatprep.mubr.bf16.mxu0 0
  %199 = vmatmul.mubr.bf16.gmra.mxu0 %v81
  %v200 = vpop.f32.mrf.mxu0
  %v201 = vadd.f32 0.0, %v200
  %v202 = vpop.f32.mrf.mxu0
  %v203 = vpop.f32.mrf.mxu0
  %v204 = vadd.f32 0.0, %v203
  %v205 = vpop.f32.mrf.mxu0
  %206 = vmatprep.mubr.bf16.mxu0 0
  %207 = vmatmul.mubr.bf16.gmra.mxu0 %v82
  %v208 = vpop.f32.mrf.mxu0
  %v209 = vadd.f32 0.0, %v208
  %v210 = vpop.f32.mrf.mxu0
  %v211 = vpop.f32.mrf.mxu0
  %v212 = vadd.f32 0.0, %v211
  %v213 = vpop.f32.mrf.mxu0
  %214 = vmatprep.mubr.bf16.mxu0 0
  %215 = vmatmul.mubr.bf16.gmra.mxu0 %v83
  %v216 = vpop.f32.mrf.mxu0
  %v217 = vadd.f32 0.0, %v216
  %v218 = vpop.f32.mrf.mxu0
  %v219 = vpop.f32.mrf.mxu0
  %v220 = vadd.f32 0.0, %v219
  %v221 = vpop.f32.mrf.mxu0
  %222 = vmatprep.mubr.bf16.mxu0 0
  %223 = vmatmul.mubr.bf16.gmra.mxu0 %v84
  %v224 = vpop.f32.mrf.mxu0
  %v225 = vadd.f32 0.0, %v224
  %v226 = vpop.f32.mrf.mxu0
  %v227 = vpop.f32.mrf.mxu0
  %v228 = vadd.f32 0.0, %v227
  %v229 = vpop.f32.mrf.mxu0
  %230 = vmatprep.mubr.bf16.mxu0 0
  %231 = vmatmul.mubr.bf16.gmra.mxu0 %v85
  %v232 = vpop.f32.mrf.mxu0
  %v233 = vadd.f32 0.0, %v232
  %v234 = vpop.f32.mrf.mxu0
  %v235 = vpop.f32.mrf.mxu0
  %v236 = vadd.f32 0.0, %v235
  %v237 = vpop.f32.mrf.mxu0
  %238 = vdwg.mxu0
  %239 = vst [vmem:[%s2] sm:$0xff] %v177
  %240 = vst [vmem:[%s2 + $0x8] sm:$0xff] %v180
  %241 = vst [vmem:[%s2 + $0x10] sm:$0xff] %v185
  %242 = vst [vmem:[%s2 + $0x18] sm:$0xff] %v188
  %243 = vst [vmem:[%s2 + $0x20] sm:$0xff] %v193
  %244 = vst [vmem:[%s2 + $0x28] sm:$0xff] %v196
  %245 = vst [vmem:[%s2 + $0x30] sm:$0xff] %v201
  %246 = vst [vmem:[%s2 + $0x38] sm:$0xff] %v204
  %247 = vst [vmem:[%s2 + $0x40] sm:$0xff] %v209
  %248 = vst [vmem:[%s2 + $0x48] sm:$0xff] %v212
  %249 = vst [vmem:[%s2 + $0x50] sm:$0xff] %v217
  %250 = vst [vmem:[%s2 + $0x58] sm:$0xff] %v220
  %251 = vst [vmem:[%s2 + $0x60] sm:$0xff] %v225
  %252 = vst [vmem:[%s2 + $0x68] sm:$0xff] %v228
  %253 = vst [vmem:[%s2 + $0x70] sm:$0xff] %v233
  %254 = vst [vmem:[%s2 + $0x78] sm:$0xff] %v236
  %v255 = vadd.f32 %v177, %v180
  %v256 = vadd.f32 %v255, %v185
  %v257 = vadd.f32 %v256, %v188
  %v258 = vadd.f32 %v257, %v193
  %v259 = vadd.f32 %v258, %v196
  %v260 = vadd.f32 %v259, %v201
  %v261 = vadd.f32 %v260, %v204
  %v262 = vadd.f32 %v261, %v209
  %v263 = vadd.f32 %v262, %v212
  %v264 = vadd.f32 %v263, %v217
  %v265 = vadd.f32 %v264, %v220
  %v266 = vadd.f32 %v265, %v225
  %v267 = vadd.f32 %v266, %v228
  %v268 = vadd.f32 %v267, %v233
  %v269 = vadd.f32 %v268, %v236
  %v270 = vrot.slane %v269, 4
  %v271 = vadd.f32 %v269, %v270
  %v272 = vrot.slane %v271, 2
  %v273 = vadd.f32 %v271, %v272
  %v274 = vrot.slane %v273, 1
  %v275 = vadd.f32 %v273, %v274
  %v276 = vmul.f32 %v177, %v177
  %v277 = vmul.f32 %v180, %v180
  %v278 = vmul.f32 %v185, %v185
  %v279 = vmul.f32 %v188, %v188
  %v280 = vmul.f32 %v193, %v193
  %v281 = vmul.f32 %v196, %v196
  %v282 = vmul.f32 %v201, %v201
  %v283 = vmul.f32 %v204, %v204
  %v284 = vmul.f32 %v209, %v209
  %v285 = vmul.f32 %v212, %v212
  %v286 = vmul.f32 %v217, %v217
  %v287 = vmul.f32 %v220, %v220
  %v288 = vmul.f32 %v225, %v225
  %v289 = vmul.f32 %v228, %v228
  %v290 = vmul.f32 %v233, %v233
  %v291 = vmul.f32 %v236, %v236
  %v292 = vadd.f32 %v276, %v277
  %v293 = vadd.f32 %v292, %v278
  %v294 = vadd.f32 %v293, %v279
  %v295 = vadd.f32 %v294, %v280
  %v296 = vadd.f32 %v295, %v281
  %v297 = vadd.f32 %v296, %v282
  %v298 = vadd.f32 %v297, %v283
  %v299 = vadd.f32 %v298, %v284
  %v300 = vadd.f32 %v299, %v285
  %v301 = vadd.f32 %v300, %v286
  %v302 = vadd.f32 %v301, %v287
  %v303 = vadd.f32 %v302, %v288
  %v304 = vadd.f32 %v303, %v289
  %v305 = vadd.f32 %v304, %v290
  %v306 = vadd.f32 %v305, %v291
  %v307 = vrot.slane %v306, 4
  %v308 = vadd.f32 %v306, %v307
  %v309 = vrot.slane %v308, 2
  %v310 = vadd.f32 %v308, %v309
  %v311 = vrot.slane %v310, 1
  %v312 = vadd.f32 %v310, %v311
  %v313 = vlaneseq
  %v314 = vshrl.u32 %v313, 7
  %vm315 = vcmp.eq.s32.totalorder %v314, 0
  %vm316 = vcmp.eq.s32.totalorder %v314, 1
  %v317 = vsel %vm316, %v312, 0.0
  %v318 = vsel %vm315, %v275, %v317
  %319 = vst [vmem:[%s3] sm:$0xff] %v318
  // Predicated region
  $region10: #{conv_bn_layer_forward.2} parent=0 // pred_check
    _
  $region11: #{conv_bn_layer_forward.2} parent=0 // pred_check_branch
    %321 = sbr.rel (0) target = $region13
  $region12: #{conv_bn_layer_forward.2} parent=0 // pred_region
    _
  $region13: #{conv_bn_layer_forward.2} parent=0 // pred_fallthru
    _
  // Predicated region
  $region14: #{conv_bn_layer_forward.2} parent=0 // pred_check
    _
  $region15: #{conv_bn_layer_forward.2} parent=0 // pred_check_branch
    %323 = sbr.rel (0) target = $region17
  $region16: #{conv_bn_layer_forward.2} parent=0 // pred_region
    _
  $region17: #{conv_bn_layer_forward.2} parent=0 // pred_fallthru
    _
  // Predicated region
  $region18: #{conv_bn_layer_forward.2} parent=0 // pred_check
    _
  $region19: #{conv_bn_layer_forward.2} parent=0 // pred_check_branch
    %325 = sbr.rel (0) target = $region21
  $region20: #{conv_bn_layer_forward.2} parent=0 // pred_region
    _
  $region21: #{conv_bn_layer_forward.2} parent=0 // pred_fallthru
    _
  // Predicated region
  $region22: #{conv_bn_layer_forward.2} parent=0 // pred_check
    _
  $region23: #{conv_bn_layer_forward.2} parent=0 // pred_check_branch
    %327 = sbr.rel (0) target = $region25
  $region24: #{conv_bn_layer_forward.2} parent=0 // pred_region
    _
  $region25: #{conv_bn_layer_forward.2} parent=0 // pred_fallthru
    _

</llo_original>
